<compile_context>
chip_gen: v7x
topology: tpu7x:2x2x1
jax: 0.10.0
libtpu: 0.0.40
codegen_flags: <defaults>
</compile_context>

<pallas_src>
import jax
import jax.numpy as jnp
from jax.experimental import pallas as pl
from jax.experimental.pallas import tpu as pltpu

_HIDDEN = (128, 64, 32, 16)   # fixed by the PyTorch module
_PAD = 128                    # widest hidden layer -> lane-dense padded width


def _layer_dims(input_size, num_units):
    dims = (input_size,) + _HIDDEN + (num_units,)
    return list(zip(dims[:-1], dims[1:]))   # [(48,128),(128,64),(64,32),(32,16),(16,nu)]


def _round_up(n, m):
    return ((n + m - 1) // m) * m


def _encoder_kernel(x_ref, w1_ref, ws_ref, bs_ref, out_ref):
    cdt = w1_ref.dtype  # MXU input dtype (bf16 in perf mode, f32 in check mode)

    # Layer 1: (TB, input_size) @ (input_size, 128), f32 accumulate.
    h = jnp.dot(x_ref[...].astype(cdt), w1_ref[...],
                preferred_element_type=jnp.float32)
    h = jnp.tanh(h + bs_ref[0:1, :])          # (TB, 128) f32 elementwise

    # Layers 2..5: zero-padded (128,128) weights keep h lane-dense (TB, 128);
    # padded lanes stay exactly zero through bias-add + tanh.
    for i in range(4):
        h = jnp.dot(h.astype(cdt), ws_ref[i],
                    preferred_element_type=jnp.float32)
        h = jnp.tanh(h + bs_ref[i + 1:i + 2, :])

    out_ref[...] = h[:, :out_ref.shape[1]].astype(out_ref.dtype)


def _pack_params(params, input_size, num_units, compute_dtype):
    """Pack 5 weights + 5 biases into (w1, padded weight stack, bias slab)."""
    dims = _layer_dims(input_size, num_units)
    w1 = params["w1"].astype(compute_dtype)                     # (48, 128)
    ws = jnp.zeros((4, _PAD, _PAD), compute_dtype)
    bs = jnp.zeros((len(dims), _PAD), jnp.float32)
    bs = bs.at[0, :dims[0][1]].set(params["b1"])
    for i, (fi, fo) in enumerate(dims[1:]):
        ws = ws.at[i, :fi, :fo].set(params[f"w{i + 2}"].astype(compute_dtype))
        bs = bs.at[i + 1, :fo].set(params[f"b{i + 2}"])
    return w1, ws, bs


def encoder_forward(x, params, *, block_batch=256, compute_dtype=jnp.bfloat16):
    """Encoder_2.forward(X): returns encoded of shape (batch, num_units)."""
    batch, input_size = x.shape
    num_units = params["w5"].shape[1]

    w1, ws, bs = _pack_params(params, input_size, num_units, compute_dtype)

    # Batch tiling: TB rows per grid step (multiple of 8); pad the tail tile.
    tb = min(block_batch, _round_up(batch, 8))
    padded_batch = _round_up(batch, tb)
    x_in = x if padded_batch == batch else jnp.pad(
        x, ((0, padded_batch - batch), (0, 0)))

    grid = (padded_batch // tb,)

    cost = pl.CostEstimate(
        flops=2 * padded_batch * (input_size * _PAD + 4 * _PAD * _PAD),
        transcendentals=padded_batch * 5 * _PAD,
        bytes_accessed=(padded_batch * (input_size + num_units) * 4
                        + w1.size * w1.dtype.itemsize
                        + ws.size * ws.dtype.itemsize
                        + bs.size * 4),
    )

    out = pl.pallas_call(
        _encoder_kernel,
        out_shape=jax.ShapeDtypeStruct((padded_batch, num_units), jnp.float32),
        grid_spec=pltpu.PrefetchScalarGridSpec(
            num_scalar_prefetch=0,
            grid=grid,
            in_specs=[
                pl.BlockSpec((tb, input_size), lambda i: (i, 0)),   # x tile (pipelined)
                pl.BlockSpec(w1.shape, lambda i: (0, 0)),           # layer-1 W (resident)
                pl.BlockSpec(ws.shape, lambda i: (0, 0, 0)),        # W stack  (resident)
                pl.BlockSpec(bs.shape, lambda i: (0, 0)),           # bias slab (resident)
            ],
            out_specs=pl.BlockSpec((tb, num_units), lambda i: (i, 0)),
        ),
        compiler_params=pltpu.CompilerParams(
            dimension_semantics=("parallel",),
            vmem_limit_bytes=32 << 20,
        ),
        cost_estimate=cost,
    )(x_in, w1, ws, bs)

    return out[:batch]


def init_params(key, input_size, num_units):
    """PyTorch-Linear-style init (uniform +/- 1/sqrt(fan_in)); W stored (in, out)."""
    params = {}
    for idx, (fan_in, fan_out) in enumerate(_layer_dims(input_size, num_units), start=1):
        key, kw, kb = jax.random.split(key, 3)
        bound = 1.0 / (fan_in ** 0.5)
        params[f"w{idx}"] = jax.random.uniform(
            kw, (fan_in, fan_out), jnp.float32, minval=-bound, maxval=bound)
        params[f"b{idx}"] = jax.random.uniform(
            kb, (fan_out,), jnp.float32, minval=-bound, maxval=bound)
    return params


def reference_forward(x, params):
    """Plain-JAX f32 reference (highest precision) for correctness checking."""
    hp = jax.lax.Precision.HIGHEST
    h = x
    for i in range(1, 6):
        h = jnp.tanh(jnp.dot(h, params[f"w{i}"], precision=hp) + params[f"b{i}"])
    return h


if __name__ == "__main__":
    INPUT_SIZE = 48
    NUM_UNITS = 3
    BATCH = 8

    key = jax.random.PRNGKey(0)
    key, kx = jax.random.split(key)
    x = jax.random.normal(kx, (BATCH, INPUT_SIZE), jnp.float32)
    params = init_params(key, INPUT_SIZE, NUM_UNITS)

    ref = reference_forward(x, params)

    # f32 compute path: exact-semantics check of the kernel.
    enc_f32 = jax.block_until_ready(
        encoder_forward(x, params, compute_dtype=jnp.float32))
    assert enc_f32.shape == (BATCH, NUM_UNITS)
    assert jnp.allclose(enc_f32, ref, atol=1e-4, rtol=1e-4), "f32 path mismatch"

    # bf16 perf path (MXU-native inputs, f32 accumulation) - looser tolerance.
    enc_bf16 = jax.block_until_ready(
        encoder_forward(x, params, compute_dtype=jnp.bfloat16))
    assert enc_bf16.shape == (BATCH, NUM_UNITS)
    assert jnp.allclose(enc_bf16, ref, atol=5e-2), "bf16 path mismatch"

    # Multi-tile grid path (batch > block tile, ragged tail) to exercise the
    # pipelined / parallel grid and tail padding.
    key, kx2 = jax.random.split(key)
    x_big = jax.random.normal(kx2, (300, INPUT_SIZE), jnp.float32)
    ref_big = reference_forward(x_big, params)
    enc_big = jax.block_until_ready(
        encoder_forward(x_big, params, block_batch=128))
    assert enc_big.shape == (300, NUM_UNITS)
    assert jnp.allclose(enc_big, ref_big, atol=5e-2), "tiled path mismatch"

    print("KERNEL_OK")
</pallas_src>

<mosaic_0001>
module attributes {stable_mosaic.version = 11 : i64} {
  func.func @_encoder_kernel(%arg0: i32, %arg1: memref<8x48xf32, #tpu.memory_space<vmem>>, %arg2: memref<48x128xf32, #tpu.memory_space<vmem>>, %arg3: memref<4x128x128xf32, #tpu.memory_space<vmem>>, %arg4: memref<5x128xf32, #tpu.memory_space<vmem>>, %arg5: memref<8x3xf32, #tpu.memory_space<vmem>>) attributes {dimension_semantics = [#tpu.dimension_semantics<parallel>], iteration_bounds = array<i64: 1>, scalar_prefetch = 0 : i64, scratch_operands = 0 : i64, tpu.core_type = #tpu.core_type<tc>, window_params = [{transform_indices = @transform_0, window_bounds = array<i64: 8, 48>}, {pipeline_mode = #tpu.pipeline_mode<synchronous>, transform_indices = @transform_1, window_bounds = array<i64: 48, 128>}, {pipeline_mode = #tpu.pipeline_mode<synchronous>, transform_indices = @transform_2, window_bounds = array<i64: 4, 128, 128>}, {pipeline_mode = #tpu.pipeline_mode<synchronous>, transform_indices = @transform_3, window_bounds = array<i64: 5, 128>}, {transform_indices = @transform_4, window_bounds = array<i64: 8, 3>}]} {
    %c0 = arith.constant 0 : index
    %c0_0 = arith.constant 0 : index
    %0 = vector.load %arg1[%c0, %c0_0] : memref<8x48xf32, #tpu.memory_space<vmem>>, vector<8x48xf32>
    %c0_1 = arith.constant 0 : index
    %c0_2 = arith.constant 0 : index
    %1 = vector.load %arg2[%c0_1, %c0_2] : memref<48x128xf32, #tpu.memory_space<vmem>>, vector<48x128xf32>
    %cst = arith.constant dense<0.000000e+00> : vector<8x128xf32>
    %2 = tpu.matmul %0, %1, %cst {dimension_numbers = #tpu.dot_dimension_numbers<[1], [0], [0], [1], [0, 0, 1, 1], [], []>} : vector<8x48xf32>, vector<48x128xf32>, vector<8x128xf32> -> vector<8x128xf32>
    %c0_3 = arith.constant 0 : index
    %c0_4 = arith.constant 0 : index
    %3 = vector.load %arg4[%c0_3, %c0_4] : memref<5x128xf32, #tpu.memory_space<vmem>>, vector<1x128xf32>
    %4 = vector.broadcast %3 : vector<1x128xf32> to vector<8x128xf32>
    %5 = arith.addf %2, %4 : vector<8x128xf32>
    %6 = math.tanh %5 : vector<8x128xf32>
    %c0_5 = arith.constant 0 : index
    %c0_6 = arith.constant 0 : index
    %c0_7 = arith.constant 0 : index
    %7 = vector.load %arg3[%c0_5, %c0_6, %c0_7] : memref<4x128x128xf32, #tpu.memory_space<vmem>>, vector<1x128x128xf32>
    %8 = vector.shape_cast %7 : vector<1x128x128xf32> to vector<128x128xf32>
    %cst_8 = arith.constant dense<0.000000e+00> : vector<8x128xf32>
    %9 = tpu.matmul %6, %8, %cst_8 {dimension_numbers = #tpu.dot_dimension_numbers<[1], [0], [0], [1], [0, 0, 1, 1], [], []>} : vector<8x128xf32>, vector<128x128xf32>, vector<8x128xf32> -> vector<8x128xf32>
    %c1 = arith.constant 1 : index
    %c0_9 = arith.constant 0 : index
    %10 = vector.load %arg4[%c1, %c0_9] : memref<5x128xf32, #tpu.memory_space<vmem>>, vector<1x128xf32>
    %11 = vector.broadcast %10 : vector<1x128xf32> to vector<8x128xf32>
    %12 = arith.addf %9, %11 : vector<8x128xf32>
    %13 = math.tanh %12 : vector<8x128xf32>
    %c1_10 = arith.constant 1 : index
    %c0_11 = arith.constant 0 : index
    %c0_12 = arith.constant 0 : index
    %14 = vector.load %arg3[%c1_10, %c0_11, %c0_12] : memref<4x128x128xf32, #tpu.memory_space<vmem>>, vector<1x128x128xf32>
    %15 = vector.shape_cast %14 : vector<1x128x128xf32> to vector<128x128xf32>
    %cst_13 = arith.constant dense<0.000000e+00> : vector<8x128xf32>
    %16 = tpu.matmul %13, %15, %cst_13 {dimension_numbers = #tpu.dot_dimension_numbers<[1], [0], [0], [1], [0, 0, 1, 1], [], []>} : vector<8x128xf32>, vector<128x128xf32>, vector<8x128xf32> -> vector<8x128xf32>
    %c2 = arith.constant 2 : index
    %c0_14 = arith.constant 0 : index
    %17 = vector.load %arg4[%c2, %c0_14] : memref<5x128xf32, #tpu.memory_space<vmem>>, vector<1x128xf32>
    %18 = vector.broadcast %17 : vector<1x128xf32> to vector<8x128xf32>
    %19 = arith.addf %16, %18 : vector<8x128xf32>
    %20 = math.tanh %19 : vector<8x128xf32>
    %c2_15 = arith.constant 2 : index
    %c0_16 = arith.constant 0 : index
    %c0_17 = arith.constant 0 : index
    %21 = vector.load %arg3[%c2_15, %c0_16, %c0_17] : memref<4x128x128xf32, #tpu.memory_space<vmem>>, vector<1x128x128xf32>
    %22 = vector.shape_cast %21 : vector<1x128x128xf32> to vector<128x128xf32>
    %cst_18 = arith.constant dense<0.000000e+00> : vector<8x128xf32>
    %23 = tpu.matmul %20, %22, %cst_18 {dimension_numbers = #tpu.dot_dimension_numbers<[1], [0], [0], [1], [0, 0, 1, 1], [], []>} : vector<8x128xf32>, vector<128x128xf32>, vector<8x128xf32> -> vector<8x128xf32>
    %c3 = arith.constant 3 : index
    %c0_19 = arith.constant 0 : index
    %24 = vector.load %arg4[%c3, %c0_19] : memref<5x128xf32, #tpu.memory_space<vmem>>, vector<1x128xf32>
    %25 = vector.broadcast %24 : vector<1x128xf32> to vector<8x128xf32>
    %26 = arith.addf %23, %25 : vector<8x128xf32>
    %27 = math.tanh %26 : vector<8x128xf32>
    %c3_20 = arith.constant 3 : index
    %c0_21 = arith.constant 0 : index
    %c0_22 = arith.constant 0 : index
    %28 = vector.load %arg3[%c3_20, %c0_21, %c0_22] : memref<4x128x128xf32, #tpu.memory_space<vmem>>, vector<1x128x128xf32>
    %29 = vector.shape_cast %28 : vector<1x128x128xf32> to vector<128x128xf32>
    %cst_23 = arith.constant dense<0.000000e+00> : vector<8x128xf32>
    %30 = tpu.matmul %27, %29, %cst_23 {dimension_numbers = #tpu.dot_dimension_numbers<[1], [0], [0], [1], [0, 0, 1, 1], [], []>} : vector<8x128xf32>, vector<128x128xf32>, vector<8x128xf32> -> vector<8x128xf32>
    %c4 = arith.constant 4 : index
    %c0_24 = arith.constant 0 : index
    %31 = vector.load %arg4[%c4, %c0_24] : memref<5x128xf32, #tpu.memory_space<vmem>>, vector<1x128xf32>
    %32 = vector.broadcast %31 : vector<1x128xf32> to vector<8x128xf32>
    %33 = arith.addf %30, %32 : vector<8x128xf32>
    %34 = math.tanh %33 : vector<8x128xf32>
    %35 = vector.extract_strided_slice %34 {offsets = [0, 0], sizes = [8, 3], strides = [1, 1]} : vector<8x128xf32> to vector<8x3xf32>
    %c0_25 = arith.constant 0 : index
    %c0_26 = arith.constant 0 : index
    %36 = vector.load %arg5[%c0_25, %c0_26] : memref<8x3xf32, #tpu.memory_space<vmem>>, vector<8x3xf32>
    tpu.vector_store %arg5[%c0_25, %c0_26], %35 {strides = array<i32>} : memref<8x3xf32, #tpu.memory_space<vmem>>, vector<8x3xf32>,
    return
  }
  func.func @transform_0(%arg0: i32) -> (i32, i32) {
    %c0_i32 = arith.constant 0 : i32
    %c0_i32_0 = arith.constant 0 : i32
    return %arg0, %c0_i32 : i32, i32
  }
  func.func @transform_1(%arg0: i32) -> (i32, i32) {
    %c0_i32 = arith.constant 0 : i32
    %c0_i32_0 = arith.constant 0 : i32
    %c0_i32_1 = arith.constant 0 : i32
    return %c0_i32, %c0_i32_0 : i32, i32
  }
  func.func @transform_2(%arg0: i32) -> (i32, i32, i32) {
    %c0_i32 = arith.constant 0 : i32
    %c0_i32_0 = arith.constant 0 : i32
    %c0_i32_1 = arith.constant 0 : i32
    %c0_i32_2 = arith.constant 0 : i32
    return %c0_i32, %c0_i32_0, %c0_i32_1 : i32, i32, i32
  }
  func.func @transform_3(%arg0: i32) -> (i32, i32) {
    %c0_i32 = arith.constant 0 : i32
    %c0_i32_0 = arith.constant 0 : i32
    %c0_i32_1 = arith.constant 0 : i32
    return %c0_i32, %c0_i32_0 : i32, i32
  }
  func.func @transform_4(%arg0: i32) -> (i32, i32) {
    %c0_i32 = arith.constant 0 : i32
    %c0_i32_0 = arith.constant 0 : i32
    return %arg0, %c0_i32 : i32, i32
  }
}

</mosaic_0001>

<llo_original>
// kernel: tpu_custom_call.1
$region0: #{tpu_custom_call.1}
  #allocation0 [shape = 'u32[]', space=smem, size = 0x4, offset = 0x4, fixed_abs, tag = 'smem constant byte address 0x4 - core index']
  #allocation1 [shape = 'u32[144,128]{1,0:T(1,128)}', space=vmem, size = 0x12000, scoped, tag = 'internal scratch']
  %s0 = inlined_call_operand.hbm [shape: f32[8,48], index: 0, kind: input, shape index: {}]
  %s1 = inlined_call_operand.hbm [shape: f32[48,128], index: 1, kind: input, shape index: {}]
  %s2 = inlined_call_operand.hbm [shape: f32[4,128,128], index: 2, kind: input, shape index: {}]
  %s3 = inlined_call_operand.vmem [shape: f32[5,128], index: 3, kind: input, shape index: {}]
  %s4 = inlined_call_operand.vmem [shape: f32[8,3], index: 4, kind: output, shape index: {}]
  %s5 = sld [smem:[#allocation0]]
  $region38: #{tpu_custom_call.1} parent=0
    _
  %s7 = ssub.s32 1, %s5
  %s8 = scalar_select 0, %s7, %s5
  $region1: #{tpu_custom_call.1} parent=0
    #allocation2 [shape = 'u8[4096]{0}', space=vmem, size = 0x1000, scoped, tag = 'input window, operand 0, single buffered']
    #allocation3 [shape = 's32[1]{0}', space=sflag, size = 0x4, scoped, tag = 'scoped memory for tpu_custom_call.1']
    #allocation4 [shape = 'u8[24576]{0}', space=vmem, size = 0x6000, scoped, tag = 'input window, operand 1, single buffered']
    #allocation5 [shape = 's32[1]{0}', space=sflag, size = 0x4, scoped, tag = 'scoped memory for tpu_custom_call.1']
    #allocation6 [shape = 'u8[262144]{0}', space=vmem, size = 0x40000, scoped, tag = 'input window, operand 2, single buffered']
    %9 = vsyncpa [#allocation3], 0
    %10 = vsyncpa [#allocation5], 0
    // Predicated region
    $region2: #{tpu_custom_call.1} parent=1 // pred_check
      _
    $region3: #{tpu_custom_call.1} parent=1 // pred_check_branch
      %12 = sbr.rel (0) target = $region5
    $region4: #{tpu_custom_call.1} parent=1 // pred_region
      %s14 = ssub.s32 128, 128
      %15 = vsyncadd [#allocation3], %s14
      %s17 = sshll.u32 [#allocation2], 4
      %s18 = int_to_ptr.vmem [resolvable:$true] %s17
      %20 = dma.hbm_to_vmem [thread:$0]  %s0, 128, %s18, [#allocation3]
    $region5: #{tpu_custom_call.1} parent=1 // pred_fallthru
      _
    // Predicated region
    $region6: #{tpu_custom_call.1} parent=1 // pred_check
      _
    $region7: #{tpu_custom_call.1} parent=1 // pred_check_branch
      %22 = sbr.rel (0) target = $region9
    $region8: #{tpu_custom_call.1} parent=1 // pred_region
      %s24 = ssub.s32 768, 768
      %25 = vsyncadd [#allocation5], %s24
      %s26 = sshll.u32 [#allocation4], 4
      %s27 = int_to_ptr.vmem [resolvable:$true] %s26
      %32 = dma.hbm_to_vmem [thread:$0]  %s1, 768, %s27, [#allocation5], 128, 128, 8
    $region9: #{tpu_custom_call.1} parent=1 // pred_fallthru
      _
    // Predicated region
    $region10: #{tpu_custom_call.1} parent=1 // pred_check
      _
    $region11: #{tpu_custom_call.1} parent=1 // pred_check_branch
      %34 = sbr.rel (0) target = $region13
    $region12: #{tpu_custom_call.1} parent=1 // pred_region
      %s36 = ssub.s32 8192, 8192
      %37 = vsyncadd [#allocation5], %s36
      %s38 = sshll.u32 [#allocation6], 4
      %s39 = int_to_ptr.vmem [resolvable:$true] %s38
      %44 = dma.hbm_to_vmem [thread:$0]  %s2, 8192, %s39, [#allocation5], 128, 128, 8
    $region13: #{tpu_custom_call.1} parent=1 // pred_fallthru
      _
    // Predicated region
    $region14: #{tpu_custom_call.1} parent=1 // pred_check
      _
    $region15: #{tpu_custom_call.1} parent=1 // pred_check_branch
      %46 = sbr.rel (0) target = $region17
    $region16: #{tpu_custom_call.1} parent=1 // pred_region
      _
    $region17: #{tpu_custom_call.1} parent=1 // pred_fallthru
      _
    // Predicated region
    $region18: #{tpu_custom_call.1} parent=1 // pred_check
      _
    $region19: #{tpu_custom_call.1} parent=1 // pred_check_branch
      %48 = sbr.rel (0) target = $region21
    $region20: #{tpu_custom_call.1} parent=1 // pred_region
      %49 = dma.done [#allocation3], 128
    $region21: #{tpu_custom_call.1} parent=1 // pred_fallthru
      _
    // Predicated region
    $region22: #{tpu_custom_call.1} parent=1 // pred_check
      _
    $region23: #{tpu_custom_call.1} parent=1 // pred_check_branch
      %51 = sbr.rel (0) target = $region25
    $region24: #{tpu_custom_call.1} parent=1 // pred_region
      %52 = dma.done [#allocation5], 768
    $region25: #{tpu_custom_call.1} parent=1 // pred_fallthru
      _
    // Predicated region
    $region26: #{tpu_custom_call.1} parent=1 // pred_check
      _
    $region27: #{tpu_custom_call.1} parent=1 // pred_check_branch
      %54 = sbr.rel (0) target = $region29
    $region28: #{tpu_custom_call.1} parent=1 // pred_region
      %55 = dma.done [#allocation5], 8192
    $region29: #{tpu_custom_call.1} parent=1 // pred_fallthru
      _
    %v56 = vld [vmem:[#allocation2] sm:$0xff]
    %v57 = vld [vmem:[#allocation4] sm:$0xff]
    %v58 = vld [vmem:[#allocation4 + $0x8] sm:$0xff]
    %v59 = vld [vmem:[#allocation4 + $0x10] sm:$0xff]
    %v60 = vld [vmem:[#allocation4 + $0x18] sm:$0xff]
    %v61 = vld [vmem:[#allocation4 + $0x20] sm:$0xff]
    %v62 = vld [vmem:[#allocation4 + $0x28] sm:$0xff]
    %v63 = vld [vmem:[%s3] sm:$0x1]
    %v64 = vlaneseq
    %v65 = vshrl.u32 %v64, 7
    %v66 = vsub.s32 0, %v65
    %v67 = vrot.slane %v63, %v66
    %vm68 = vcmask 392192
    %v70 = vsel %vm68, %v56, 0
    %72 = vmatprep.subr.mxu0 0.0
    %73 = vmatpush1.msra.mxu0 %v57
    %74 = vmatprep.subr.mxu0 0.0
    %75 = vmatpush1.msra.mxu0 %v58
    %76 = vmatprep.subr.mxu0 0.0
    %77 = vmatpush1.msra.mxu0 %v59
    %78 = vmatprep.subr.mxu0 0.0
    %79 = vmatpush1.msra.mxu0 %v60
    %80 = vmatprep.subr.mxu0 0.0
    %81 = vmatpush1.msra.mxu0 %v61
    %82 = vmatprep.subr.mxu0 0.0
    %83 = vmatpush1.msra.mxu0 %v62
    %84 = vmatprep.subr.mxu0 0.0
    %85 = vmatpush1.msra.mxu0 0.0
    %86 = vmatprep.subr.mxu0 0.0
    %87 = vmatpush1.msra.mxu0 0.0
    %88 = vmatprep.subr.mxu0 0.0
    %89 = vmatpush1.msra.mxu0 0.0
    %90 = vmatprep.subr.mxu0 0.0
    %91 = vmatpush1.msra.mxu0 0.0
    %92 = vmatprep.subr.mxu0 0.0
    %93 = vmatpush1.msra.mxu0 0.0
    %94 = vmatprep.subr.mxu0 0.0
    %95 = vmatpush1.msra.mxu0 0.0
    %96 = vmatprep.subr.mxu0 0.0
    %97 = vmatpush1.msra.mxu0 0.0
    %98 = vmatprep.subr.mxu0 0.0
    %99 = vmatpush1.msra.mxu0 0.0
    %100 = vmatprep.subr.mxu0 0.0
    %101 = vmatpush1.msra.mxu0 0.0
    %102 = vmatprep.subr.mxu0 0.0
    %103 = vmatpush1.msra.mxu0 0.0
    %104 = vmatprep.subr.mxu0 0.0
    %105 = vmatpush1.msra.mxu0 0.0
    %106 = vmatprep.subr.mxu0 0.0
    %107 = vmatpush1.msra.mxu0 0.0
    %108 = vmatprep.subr.mxu0 0.0
    %109 = vmatpush1.msra.mxu0 0.0
    %110 = vmatprep.subr.mxu0 0.0
    %111 = vmatpush1.msra.mxu0 0.0
    %112 = vmatprep.subr.mxu0 0.0
    %113 = vmatpush1.msra.mxu0 0.0
    %114 = vmatprep.subr.mxu0 0.0
    %115 = vmatpush1.msra.mxu0 0.0
    %116 = vmatprep.subr.mxu0 0.0
    %117 = vmatpush1.msra.mxu0 0.0
    %118 = vmatprep.subr.mxu0 0.0
    %119 = vmatpush1.msra.mxu0 0.0
    %120 = vmatprep.subr.mxu0 0.0
    %121 = vmatpush1.msra.mxu0 0.0
    %122 = vmatprep.subr.mxu0 0.0
    %123 = vmatpush1.msra.mxu0 0.0
    %124 = vmatprep.subr.mxu0 0.0
    %125 = vmatpush1.msra.mxu0 0.0
    %126 = vmatprep.subr.mxu0 0.0
    %127 = vmatpush1.msra.mxu0 0.0
    %128 = vmatprep.subr.mxu0 0.0
    %129 = vmatpush1.msra.mxu0 0.0
    %130 = vmatprep.subr.mxu0 0.0
    %131 = vmatpush1.msra.mxu0 0.0
    %132 = vmatprep.subr.mxu0 0.0
    %133 = vmatpush1.msra.mxu0 0.0
    %134 = vmatprep.subr.mxu0 0.0
    %135 = vmatpush1.msra.mxu0 0.0
    %136 = vmatprep.mubr.f32.mxu0 0.0
    %137 = vmatmul.mubr.f32.gmra.mrb[0].mxu0 %v70
    %v138 = vpop.f32.mrb[0].mxu0
    %v139 = vadd.f32 %v67, %v138
    %v140 = vpop.f32.mrb[0].mxu0
    %141 = vdwg.mxu0
    %v142 = vtanh.pop %v139
    %v143 = vld [vmem:[#allocation6] sm:$0xff]
    %v144 = vld [vmem:[#allocation6 + $0x8] sm:$0xff]
    %v145 = vld [vmem:[#allocation6 + $0x10] sm:$0xff]
    %v146 = vld [vmem:[#allocation6 + $0x18] sm:$0xff]
    %v147 = vld [vmem:[#allocation6 + $0x20] sm:$0xff]
    %v148 = vld [vmem:[#allocation6 + $0x28] sm:$0xff]
    %v149 = vld [vmem:[#allocation6 + $0x30] sm:$0xff]
    %v150 = vld [vmem:[#allocation6 + $0x38] sm:$0xff]
    %v151 = vld [vmem:[#allocation6 + $0x40] sm:$0xff]
    %v152 = vld [vmem:[#allocation6 + $0x48] sm:$0xff]
    %v153 = vld [vmem:[#allocation6 + $0x50] sm:$0xff]
    %v154 = vld [vmem:[#allocation6 + $0x58] sm:$0xff]
    %v155 = vld [vmem:[#allocation6 + $0x60] sm:$0xff]
    %v156 = vld [vmem:[#allocation6 + $0x68] sm:$0xff]
    %v157 = vld [vmem:[#allocation6 + $0x70] sm:$0xff]
    %v158 = vld [vmem:[#allocation6 + $0x78] sm:$0xff]
    %v159 = vld [vmem:[%s3 + $0x1] sm:$0x1]
    %v160 = vlaneseq
    %v161 = vshrl.u32 %v160, 7
    %v162 = vsub.s32 0, %v161
    %v163 = vrot.slane %v159, %v162
    %164 = vmatprep.subr.mxu0 0.0
    %165 = vmatpush1.msra.mxu0 %v143
    %166 = vmatprep.subr.mxu0 0.0
    %167 = vmatpush1.msra.mxu0 %v144
    %168 = vmatprep.subr.mxu0 0.0
    %169 = vmatpush1.msra.mxu0 %v145
    %170 = vmatprep.subr.mxu0 0.0
    %171 = vmatpush1.msra.mxu0 %v146
    %172 = vmatprep.subr.mxu0 0.0
    %173 = vmatpush1.msra.mxu0 %v147
    %174 = vmatprep.subr.mxu0 0.0
    %175 = vmatpush1.msra.mxu0 %v148
    %176 = vmatprep.subr.mxu0 0.0
    %177 = vmatpush1.msra.mxu0 %v149
    %178 = vmatprep.subr.mxu0 0.0
    %179 = vmatpush1.msra.mxu0 %v150
    %180 = vmatprep.subr.mxu0 0.0
    %181 = vmatpush1.msra.mxu0 %v151
    %182 = vmatprep.subr.mxu0 0.0
    %183 = vmatpush1.msra.mxu0 %v152
    %184 = vmatprep.subr.mxu0 0.0
    %185 = vmatpush1.msra.mxu0 %v153
    %186 = vmatprep.subr.mxu0 0.0
    %187 = vmatpush1.msra.mxu0 %v154
    %188 = vmatprep.subr.mxu0 0.0
    %189 = vmatpush1.msra.mxu0 %v155
    %190 = vmatprep.subr.mxu0 0.0
    %191 = vmatpush1.msra.mxu0 %v156
    %192 = vmatprep.subr.mxu0 0.0
    %193 = vmatpush1.msra.mxu0 %v157
    %194 = vmatprep.subr.mxu0 0.0
    %195 = vmatpush1.msra.mxu0 %v158
    %196 = vmatprep.subr.mxu0 0.0
    %197 = vmatpush1.msra.mxu0 0.0
    %198 = vmatprep.subr.mxu0 0.0
    %199 = vmatpush1.msra.mxu0 0.0
    %200 = vmatprep.subr.mxu0 0.0
    %201 = vmatpush1.msra.mxu0 0.0
    %202 = vmatprep.subr.mxu0 0.0
    %203 = vmatpush1.msra.mxu0 0.0
    %204 = vmatprep.subr.mxu0 0.0
    %205 = vmatpush1.msra.mxu0 0.0
    %206 = vmatprep.subr.mxu0 0.0
    %207 = vmatpush1.msra.mxu0 0.0
    %208 = vmatprep.subr.mxu0 0.0
    %209 = vmatpush1.msra.mxu0 0.0
    %210 = vmatprep.subr.mxu0 0.0
    %211 = vmatpush1.msra.mxu0 0.0
    %212 = vmatprep.subr.mxu0 0.0
    %213 = vmatpush1.msra.mxu0 0.0
    %214 = vmatprep.subr.mxu0 0.0
    %215 = vmatpush1.msra.mxu0 0.0
    %216 = vmatprep.subr.mxu0 0.0
    %217 = vmatpush1.msra.mxu0 0.0
    %218 = vmatprep.subr.mxu0 0.0
    %219 = vmatpush1.msra.mxu0 0.0
    %220 = vmatprep.subr.mxu0 0.0
    %221 = vmatpush1.msra.mxu0 0.0
    %222 = vmatprep.subr.mxu0 0.0
    %223 = vmatpush1.msra.mxu0 0.0
    %224 = vmatprep.subr.mxu0 0.0
    %225 = vmatpush1.msra.mxu0 0.0
    %226 = vmatprep.subr.mxu0 0.0
    %227 = vmatpush1.msra.mxu0 0.0
    %228 = vmatprep.mubr.f32.mxu0 0.0
    %229 = vmatmul.mubr.f32.gmra.mrb[0].mxu0 %v142
    %v230 = vpop.f32.mrb[0].mxu0
    %v231 = vadd.f32 %v163, %v230
    %v232 = vpop.f32.mrb[0].mxu0
    %233 = vdwg.mxu0
    %v234 = vtanh.pop %v231
    %s235 = scalar_lea.vmem [#allocation6], 128
    %v236 = vld [vmem:[%s235] sm:$0xff]
    %v237 = vld [vmem:[%s235 + $0x8] sm:$0xff]
    %v238 = vld [vmem:[%s235 + $0x10] sm:$0xff]
    %v239 = vld [vmem:[%s235 + $0x18] sm:$0xff]
    %v240 = vld [vmem:[%s235 + $0x20] sm:$0xff]
    %v241 = vld [vmem:[%s235 + $0x28] sm:$0xff]
    %v242 = vld [vmem:[%s235 + $0x30] sm:$0xff]
    %v243 = vld [vmem:[%s235 + $0x38] sm:$0xff]
    %v244 = vld [vmem:[%s235 + $0x40] sm:$0xff]
    %v245 = vld [vmem:[%s235 + $0x48] sm:$0xff]
    %v246 = vld [vmem:[%s235 + $0x50] sm:$0xff]
    %v247 = vld [vmem:[%s235 + $0x58] sm:$0xff]
    %v248 = vld [vmem:[%s235 + $0x60] sm:$0xff]
    %v249 = vld [vmem:[%s235 + $0x68] sm:$0xff]
    %v250 = vld [vmem:[%s235 + $0x70] sm:$0xff]
    %v251 = vld [vmem:[%s235 + $0x78] sm:$0xff]
    %v252 = vld [vmem:[%s3 + $0x2] sm:$0x1]
    %v253 = vlaneseq
    %v254 = vshrl.u32 %v253, 7
    %v255 = vsub.s32 0, %v254
    %v256 = vrot.slane %v252, %v255
    %257 = vmatprep.subr.mxu0 0.0
    %258 = vmatpush1.msra.mxu0 %v236
    %259 = vmatprep.subr.mxu0 0.0
    %260 = vmatpush1.msra.mxu0 %v237
    %261 = vmatprep.subr.mxu0 0.0
    %262 = vmatpush1.msra.mxu0 %v238
    %263 = vmatprep.subr.mxu0 0.0
    %264 = vmatpush1.msra.mxu0 %v239
    %265 = vmatprep.subr.mxu0 0.0
    %266 = vmatpush1.msra.mxu0 %v240
    %267 = vmatprep.subr.mxu0 0.0
    %268 = vmatpush1.msra.mxu0 %v241
    %269 = vmatprep.subr.mxu0 0.0
    %270 = vmatpush1.msra.mxu0 %v242
    %271 = vmatprep.subr.mxu0 0.0
    %272 = vmatpush1.msra.mxu0 %v243
    %273 = vmatprep.subr.mxu0 0.0
    %274 = vmatpush1.msra.mxu0 %v244
    %275 = vmatprep.subr.mxu0 0.0
    %276 = vmatpush1.msra.mxu0 %v245
    %277 = vmatprep.subr.mxu0 0.0
    %278 = vmatpush1.msra.mxu0 %v246
    %279 = vmatprep.subr.mxu0 0.0
    %280 = vmatpush1.msra.mxu0 %v247
    %281 = vmatprep.subr.mxu0 0.0
    %282 = vmatpush1.msra.mxu0 %v248
    %283 = vmatprep.subr.mxu0 0.0
    %284 = vmatpush1.msra.mxu0 %v249
    %285 = vmatprep.subr.mxu0 0.0
    %286 = vmatpush1.msra.mxu0 %v250
    %287 = vmatprep.subr.mxu0 0.0
    %288 = vmatpush1.msra.mxu0 %v251
    %289 = vmatprep.subr.mxu0 0.0
    %290 = vmatpush1.msra.mxu0 0.0
    %291 = vmatprep.subr.mxu0 0.0
    %292 = vmatpush1.msra.mxu0 0.0
    %293 = vmatprep.subr.mxu0 0.0
    %294 = vmatpush1.msra.mxu0 0.0
    %295 = vmatprep.subr.mxu0 0.0
    %296 = vmatpush1.msra.mxu0 0.0
    %297 = vmatprep.subr.mxu0 0.0
    %298 = vmatpush1.msra.mxu0 0.0
    %299 = vmatprep.subr.mxu0 0.0
    %300 = vmatpush1.msra.mxu0 0.0
    %301 = vmatprep.subr.mxu0 0.0
    %302 = vmatpush1.msra.mxu0 0.0
    %303 = vmatprep.subr.mxu0 0.0
    %304 = vmatpush1.msra.mxu0 0.0
    %305 = vmatprep.subr.mxu0 0.0
    %306 = vmatpush1.msra.mxu0 0.0
    %307 = vmatprep.subr.mxu0 0.0
    %308 = vmatpush1.msra.mxu0 0.0
    %309 = vmatprep.subr.mxu0 0.0
    %310 = vmatpush1.msra.mxu0 0.0
    %311 = vmatprep.subr.mxu0 0.0
    %312 = vmatpush1.msra.mxu0 0.0
    %313 = vmatprep.subr.mxu0 0.0
    %314 = vmatpush1.msra.mxu0 0.0
    %315 = vmatprep.subr.mxu0 0.0
    %316 = vmatpush1.msra.mxu0 0.0
    %317 = vmatprep.subr.mxu0 0.0
    %318 = vmatpush1.msra.mxu0 0.0
    %319 = vmatprep.subr.mxu0 0.0
    %320 = vmatpush1.msra.mxu0 0.0
    %321 = vmatprep.mubr.f32.mxu0 0.0
    %322 = vmatmul.mubr.f32.gmra.mrb[0].mxu0 %v234
    %v323 = vpop.f32.mrb[0].mxu0
    %v324 = vadd.f32 %v256, %v323
    %v325 = vpop.f32.mrb[0].mxu0
    %326 = vdwg.mxu0
    %v327 = vtanh.pop %v324
    %s328 = scalar_lea.vmem [#allocation6], 256
    %v329 = vld [vmem:[%s328] sm:$0xff]
    %v330 = vld [vmem:[%s328 + $0x8] sm:$0xff]
    %v331 = vld [vmem:[%s328 + $0x10] sm:$0xff]
    %v332 = vld [vmem:[%s328 + $0x18] sm:$0xff]
    %v333 = vld [vmem:[%s328 + $0x20] sm:$0xff]
    %v334 = vld [vmem:[%s328 + $0x28] sm:$0xff]
    %v335 = vld [vmem:[%s328 + $0x30] sm:$0xff]
    %v336 = vld [vmem:[%s328 + $0x38] sm:$0xff]
    %v337 = vld [vmem:[%s328 + $0x40] sm:$0xff]
    %v338 = vld [vmem:[%s328 + $0x48] sm:$0xff]
    %v339 = vld [vmem:[%s328 + $0x50] sm:$0xff]
    %v340 = vld [vmem:[%s328 + $0x58] sm:$0xff]
    %v341 = vld [vmem:[%s328 + $0x60] sm:$0xff]
    %v342 = vld [vmem:[%s328 + $0x68] sm:$0xff]
    %v343 = vld [vmem:[%s328 + $0x70] sm:$0xff]
    %v344 = vld [vmem:[%s328 + $0x78] sm:$0xff]
    %v345 = vld [vmem:[%s3 + $0x3] sm:$0x1]
    %v346 = vlaneseq
    %v347 = vshrl.u32 %v346, 7
    %v348 = vsub.s32 0, %v347
    %v349 = vrot.slane %v345, %v348
    %350 = vmatprep.subr.mxu0 0.0
    %351 = vmatpush1.msra.mxu0 %v329
    %352 = vmatprep.subr.mxu0 0.0
    %353 = vmatpush1.msra.mxu0 %v330
    %354 = vmatprep.subr.mxu0 0.0
    %355 = vmatpush1.msra.mxu0 %v331
    %356 = vmatprep.subr.mxu0 0.0
    %357 = vmatpush1.msra.mxu0 %v332
    %358 = vmatprep.subr.mxu0 0.0
    %359 = vmatpush1.msra.mxu0 %v333
    %360 = vmatprep.subr.mxu0 0.0
    %361 = vmatpush1.msra.mxu0 %v334
    %362 = vmatprep.subr.mxu0 0.0
    %363 = vmatpush1.msra.mxu0 %v335
    %364 = vmatprep.subr.mxu0 0.0
    %365 = vmatpush1.msra.mxu0 %v336
    %366 = vmatprep.subr.mxu0 0.0
    %367 = vmatpush1.msra.mxu0 %v337
    %368 = vmatprep.subr.mxu0 0.0
    %369 = vmatpush1.msra.mxu0 %v338
    %370 = vmatprep.subr.mxu0 0.0
    %371 = vmatpush1.msra.mxu0 %v339
    %372 = vmatprep.subr.mxu0 0.0
    %373 = vmatpush1.msra.mxu0 %v340
    %374 = vmatprep.subr.mxu0 0.0
    %375 = vmatpush1.msra.mxu0 %v341
    %376 = vmatprep.subr.mxu0 0.0
    %377 = vmatpush1.msra.mxu0 %v342
    %378 = vmatprep.subr.mxu0 0.0
    %379 = vmatpush1.msra.mxu0 %v343
    %380 = vmatprep.subr.mxu0 0.0
    %381 = vmatpush1.msra.mxu0 %v344
    %382 = vmatprep.subr.mxu0 0.0
    %383 = vmatpush1.msra.mxu0 0.0
    %384 = vmatprep.subr.mxu0 0.0
    %385 = vmatpush1.msra.mxu0 0.0
    %386 = vmatprep.subr.mxu0 0.0
    %387 = vmatpush1.msra.mxu0 0.0
    %388 = vmatprep.subr.mxu0 0.0
    %389 = vmatpush1.msra.mxu0 0.0
    %390 = vmatprep.subr.mxu0 0.0
    %391 = vmatpush1.msra.mxu0 0.0
    %392 = vmatprep.subr.mxu0 0.0
    %393 = vmatpush1.msra.mxu0 0.0
    %394 = vmatprep.subr.mxu0 0.0
    %395 = vmatpush1.msra.mxu0 0.0
    %396 = vmatprep.subr.mxu0 0.0
    %397 = vmatpush1.msra.mxu0 0.0
    %398 = vmatprep.subr.mxu0 0.0
    %399 = vmatpush1.msra.mxu0 0.0
    %400 = vmatprep.subr.mxu0 0.0
    %401 = vmatpush1.msra.mxu0 0.0
    %402 = vmatprep.subr.mxu0 0.0
    %403 = vmatpush1.msra.mxu0 0.0
    %404 = vmatprep.subr.mxu0 0.0
    %405 = vmatpush1.msra.mxu0 0.0
    %406 = vmatprep.subr.mxu0 0.0
    %407 = vmatpush1.msra.mxu0 0.0
    %408 = vmatprep.subr.mxu0 0.0
    %409 = vmatpush1.msra.mxu0 0.0
    %410 = vmatprep.subr.mxu0 0.0
    %411 = vmatpush1.msra.mxu0 0.0
    %412 = vmatprep.subr.mxu0 0.0
    %413 = vmatpush1.msra.mxu0 0.0
    %414 = vmatprep.mubr.f32.mxu0 0.0
    %415 = vmatmul.mubr.f32.gmra.mrb[0].mxu0 %v327
    %v416 = vpop.f32.mrb[0].mxu0
    %v417 = vadd.f32 %v349, %v416
    %v418 = vpop.f32.mrb[0].mxu0
    %419 = vdwg.mxu0
    %v420 = vtanh.pop %v417
    %s421 = scalar_lea.vmem [#allocation6], 384
    %v422 = vld [vmem:[%s421] sm:$0xff]
    %v423 = vld [vmem:[%s421 + $0x8] sm:$0xff]
    %v424 = vld [vmem:[%s421 + $0x10] sm:$0xff]
    %v425 = vld [vmem:[%s421 + $0x18] sm:$0xff]
    %v426 = vld [vmem:[%s421 + $0x20] sm:$0xff]
    %v427 = vld [vmem:[%s421 + $0x28] sm:$0xff]
    %v428 = vld [vmem:[%s421 + $0x30] sm:$0xff]
    %v429 = vld [vmem:[%s421 + $0x38] sm:$0xff]
    %v430 = vld [vmem:[%s421 + $0x40] sm:$0xff]
    %v431 = vld [vmem:[%s421 + $0x48] sm:$0xff]
    %v432 = vld [vmem:[%s421 + $0x50] sm:$0xff]
    %v433 = vld [vmem:[%s421 + $0x58] sm:$0xff]
    %v434 = vld [vmem:[%s421 + $0x60] sm:$0xff]
    %v435 = vld [vmem:[%s421 + $0x68] sm:$0xff]
    %v436 = vld [vmem:[%s421 + $0x70] sm:$0xff]
    %v437 = vld [vmem:[%s421 + $0x78] sm:$0xff]
    %v438 = vld [vmem:[%s3 + $0x4] sm:$0x1]
    %v439 = vlaneseq
    %v440 = vshrl.u32 %v439, 7
    %v441 = vsub.s32 0, %v440
    %v442 = vrot.slane %v438, %v441
    %443 = vmatprep.subr.mxu0 0.0
    %444 = vmatpush1.msra.mxu0 %v422
    %445 = vmatprep.subr.mxu0 0.0
    %446 = vmatpush1.msra.mxu0 %v423
    %447 = vmatprep.subr.mxu0 0.0
    %448 = vmatpush1.msra.mxu0 %v424
    %449 = vmatprep.subr.mxu0 0.0
    %450 = vmatpush1.msra.mxu0 %v425
    %451 = vmatprep.subr.mxu0 0.0
    %452 = vmatpush1.msra.mxu0 %v426
    %453 = vmatprep.subr.mxu0 0.0
    %454 = vmatpush1.msra.mxu0 %v427
    %455 = vmatprep.subr.mxu0 0.0
    %456 = vmatpush1.msra.mxu0 %v428
    %457 = vmatprep.subr.mxu0 0.0
    %458 = vmatpush1.msra.mxu0 %v429
    %459 = vmatprep.subr.mxu0 0.0
    %460 = vmatpush1.msra.mxu0 %v430
    %461 = vmatprep.subr.mxu0 0.0
    %462 = vmatpush1.msra.mxu0 %v431
    %463 = vmatprep.subr.mxu0 0.0
    %464 = vmatpush1.msra.mxu0 %v432
    %465 = vmatprep.subr.mxu0 0.0
    %466 = vmatpush1.msra.mxu0 %v433
    %467 = vmatprep.subr.mxu0 0.0
    %468 = vmatpush1.msra.mxu0 %v434
    %469 = vmatprep.subr.mxu0 0.0
    %470 = vmatpush1.msra.mxu0 %v435
    %471 = vmatprep.subr.mxu0 0.0
    %472 = vmatpush1.msra.mxu0 %v436
    %473 = vmatprep.subr.mxu0 0.0
    %474 = vmatpush1.msra.mxu0 %v437
    %475 = vmatprep.subr.mxu0 0.0
    %476 = vmatpush1.msra.mxu0 0.0
    %477 = vmatprep.subr.mxu0 0.0
    %478 = vmatpush1.msra.mxu0 0.0
    %479 = vmatprep.subr.mxu0 0.0
    %480 = vmatpush1.msra.mxu0 0.0
    %481 = vmatprep.subr.mxu0 0.0
    %482 = vmatpush1.msra.mxu0 0.0
    %483 = vmatprep.subr.mxu0 0.0
    %484 = vmatpush1.msra.mxu0 0.0
    %485 = vmatprep.subr.mxu0 0.0
    %486 = vmatpush1.msra.mxu0 0.0
    %487 = vmatprep.subr.mxu0 0.0
    %488 = vmatpush1.msra.mxu0 0.0
    %489 = vmatprep.subr.mxu0 0.0
    %490 = vmatpush1.msra.mxu0 0.0
    %491 = vmatprep.subr.mxu0 0.0
    %492 = vmatpush1.msra.mxu0 0.0
    %493 = vmatprep.subr.mxu0 0.0
    %494 = vmatpush1.msra.mxu0 0.0
    %495 = vmatprep.subr.mxu0 0.0
    %496 = vmatpush1.msra.mxu0 0.0
    %497 = vmatprep.subr.mxu0 0.0
    %498 = vmatpush1.msra.mxu0 0.0
    %499 = vmatprep.subr.mxu0 0.0
    %500 = vmatpush1.msra.mxu0 0.0
    %501 = vmatprep.subr.mxu0 0.0
    %502 = vmatpush1.msra.mxu0 0.0
    %503 = vmatprep.subr.mxu0 0.0
    %504 = vmatpush1.msra.mxu0 0.0
    %505 = vmatprep.subr.mxu0 0.0
    %506 = vmatpush1.msra.mxu0 0.0
    %507 = vmatprep.mubr.f32.mxu0 0.0
    %508 = vmatmul.mubr.f32.gmra.mrb[0].mxu0 %v420
    %v509 = vpop.f32.mrb[0].mxu0
    %v510 = vadd.f32 %v442, %v509
    %v511 = vpop.f32.mrb[0].mxu0
    %512 = vdwg.mxu0
    %v513 = vtanh.pop %v510
    %vm514 = vcmask 23552
    %515 = vst.msk [vmem:[%s4] sm:$0xff] %vm514, %v513
    // Predicated region
    $region30: #{tpu_custom_call.1} parent=1 // pred_check
      _
    $region31: #{tpu_custom_call.1} parent=1 // pred_check_branch
      %517 = sbr.rel (0) target = $region33
    $region32: #{tpu_custom_call.1} parent=1 // pred_region
      _
    $region33: #{tpu_custom_call.1} parent=1 // pred_fallthru
      _
    // Predicated region
    $region34: #{tpu_custom_call.1} parent=1 // pred_check
      _
    $region35: #{tpu_custom_call.1} parent=1 // pred_check_branch
      %519 = sbr.rel (0) target = $region37
    $region36: #{tpu_custom_call.1} parent=1 // pred_region
      _
    $region37: #{tpu_custom_call.1} parent=1 // pred_fallthru
      _
    %520 = vsyncpa [#allocation3], 1
    %521 = vsyncpa [#allocation5], 1

</llo_original>
